<compile_context>
chip_gen: v7x
topology: tpu7x:2x2x1
jax: 0.10.0
libtpu: 0.0.40
codegen_flags: <defaults>
</compile_context>

<pallas_src>
import jax
import jax.numpy as jnp
from jax.experimental import pallas as pl
from jax.experimental.pallas import tpu as pltpu


def _round_up(n, m):
    return ((n + m - 1) // m) * m


def _choose_tiling(B, tm_max=4096):
    """Pick a lane-aligned batch tile relative to B (not a fixed large tile)."""
    lanes = _round_up(B, 128)
    steps = -(-lanes // tm_max)
    if lanes > 128 and steps < 2:
        # >=2 grid steps so the ("parallel",) axis can be split across v7x's 2 TCs.
        steps = 2
    tm = _round_up(-(-lanes // steps), 128)
    return tm, steps * tm          # (tile width, padded batch)


def discriminator_kernel(x_ref,
                         w1_ref, b1_ref,
                         w2_ref, b2_ref,
                         w3_ref, b3_ref,
                         w4_ref, b4_ref,
                         o_ref):
    # Feature-major layout: activations are (features, batch_tile), batch on lanes.
    x = x_ref[...]                      # (2, tm)   f32
    w1 = w1_ref[...]                    # (256, 2)  f32

    # Layer 1 (K=2): two broadcast FMAs on the VPU; bias + ReLU + bf16 cast fused
    # into a single expression (the bf16 result feeds the MXU directly).
    h1 = jnp.maximum(
        w1[:, 0:1] * x[0:1, :] + w1[:, 1:2] * x[1:2, :] + b1_ref[...], 0.0
    ).astype(jnp.bfloat16)              # (256, tm)
    # Dropout(0.3) -> identity in eval mode.

    # Layer 2: (128,256) @ (256,tm) on the MXU, bf16 inputs, f32 accumulation.
    h2 = jnp.dot(w2_ref[...], h1, preferred_element_type=jnp.float32)
    h2 = jnp.maximum(h2 + b2_ref[...], 0.0).astype(jnp.bfloat16)   # (128, tm)

    # Layer 3: (64,128) @ (128,tm) on the MXU.
    h3 = jnp.dot(w3_ref[...], h2, preferred_element_type=jnp.float32)
    h3 = jnp.maximum(h3 + b3_ref[...], 0.0)                        # (64, tm) f32

    # Layer 4 (M=1): VPU multiply + sublane reduction (XLU) instead of an MXU pass.
    # w4 is passed transposed as (64, 1) so it broadcasts over the lane axis.
    logits = jnp.sum(w4_ref[...] * h3, axis=0, keepdims=True) + b4_ref[...]  # (1, tm)
    o_ref[...] = jax.nn.sigmoid(logits)


def discriminator_forward(x, params, *, tm_max=4096):
    """x: (B, 2) float32 -> (B, 1) float32 probabilities."""
    B = x.shape[0]
    tm_eff, B_pad = _choose_tiling(B, tm_max)
    n_steps = B_pad // tm_eff

    # Feature-major input: (2, B_pad); padded columns are zero and sliced off later.
    xt = jnp.zeros((2, B_pad), jnp.float32).at[:, :B].set(x.T)

    # Weights stay in PyTorch (out, in) order; MXU operands cast to bf16 once.
    w1, b1 = params["w1"], params["b1"]                      # layer 1 runs on the VPU in f32
    w2, b2 = params["w2"].astype(jnp.bfloat16), params["b2"]
    w3, b3 = params["w3"].astype(jnp.bfloat16), params["b3"]
    w4, b4 = params["w4"].T, params["b4"]                    # (64,1) f32 for the VPU epilogue

    # Weights/biases: same block every grid step -> fetched once, resident in VMEM.
    full = lambda a: pl.BlockSpec(a.shape, lambda i: (0, 0))

    weight_args = (w1, b1, w2, b2, w3, b3, w4, b4)
    flops = 2 * B_pad * (2 * 256 + 256 * 128 + 128 * 64 + 64 * 1)
    bytes_accessed = int(
        xt.size * 4 + B_pad * 4
        + sum(int(a.size) * a.dtype.itemsize for a in weight_args))

    out = pl.pallas_call(
        discriminator_kernel,
        out_shape=jax.ShapeDtypeStruct((1, B_pad), jnp.float32),
        grid_spec=pltpu.PrefetchScalarGridSpec(
            num_scalar_prefetch=0,
            grid=(n_steps,),
            in_specs=[
                pl.BlockSpec((2, tm_eff), lambda i: (0, i)),   # x tile over batch (lanes)
                full(w1), full(b1),
                full(w2), full(b2),
                full(w3), full(b3),
                full(w4), full(b4),
            ],
            out_specs=pl.BlockSpec((1, tm_eff), lambda i: (0, i)),  # lane-dense output row
        ),
        compiler_params=pltpu.CompilerParams(
            dimension_semantics=("parallel",),
            vmem_limit_bytes=64 << 20),
        cost_estimate=pl.CostEstimate(
            flops=flops, transcendentals=B_pad, bytes_accessed=bytes_accessed),
    )(xt, *weight_args)

    return out[:, :B].T   # back to (B, 1)


def init_params(key):
    """Deterministic init matching nn.Linear: weights (out, in), biases (out, 1)."""
    dims = [(2, 256), (256, 128), (128, 64), (64, 1)]
    params = {}
    for idx, (fan_in, fan_out) in enumerate(dims, start=1):
        key, kw, kb = jax.random.split(key, 3)
        bound = 1.0 / jnp.sqrt(fan_in)
        params[f"w{idx}"] = jax.random.uniform(
            kw, (fan_out, fan_in), jnp.float32, -bound, bound)
        params[f"b{idx}"] = jax.random.uniform(
            kb, (fan_out, 1), jnp.float32, -bound, bound)
    return params


def reference_forward(x, params):
    h = jnp.maximum(x @ params["w1"].T + params["b1"].T, 0.0)
    h = jnp.maximum(h @ params["w2"].T + params["b2"].T, 0.0)
    h = jnp.maximum(h @ params["w3"].T + params["b3"].T, 0.0)
    return jax.nn.sigmoid(h @ params["w4"].T + params["b4"].T)


if __name__ == "__main__":
    key = jax.random.PRNGKey(0)
    k_param, k_x = jax.random.split(key)
    params = init_params(k_param)

    B = 70  # deliberately not a multiple of 128 to exercise the padding path
    x = jax.random.normal(k_x, (B, 2), jnp.float32)

    out = discriminator_forward(x, params)
    out = jax.block_until_ready(out)

    ref = reference_forward(x, params)
    assert out.shape == (B, 1)
    # bf16 MXU operands (f32 accumulation) -> loosened tolerance vs f32 reference.
    assert jnp.allclose(out, ref, atol=2e-2, rtol=2e-2), float(jnp.max(jnp.abs(out - ref)))

    print("KERNEL_OK")
</pallas_src>

<mosaic_0001>
module attributes {stable_mosaic.version = 11 : i64} {
  func.func @discriminator_kernel(%arg0: i32, %arg1: memref<2x128xf32, #tpu.memory_space<vmem>>, %arg2: memref<256x2xf32, #tpu.memory_space<vmem>>, %arg3: memref<256x1xf32, #tpu.memory_space<vmem>>, %arg4: memref<128x256xbf16, #tpu.memory_space<vmem>>, %arg5: memref<128x1xf32, #tpu.memory_space<vmem>>, %arg6: memref<64x128xbf16, #tpu.memory_space<vmem>>, %arg7: memref<64x1xf32, #tpu.memory_space<vmem>>, %arg8: memref<64x1xf32, #tpu.memory_space<vmem>>, %arg9: memref<1x1xf32, #tpu.memory_space<vmem>>, %arg10: memref<1x128xf32, #tpu.memory_space<vmem>>) attributes {dimension_semantics = [#tpu.dimension_semantics<parallel>], iteration_bounds = array<i64: 1>, scalar_prefetch = 0 : i64, scratch_operands = 0 : i64, tpu.core_type = #tpu.core_type<tc>, window_params = [{transform_indices = @transform_0, window_bounds = array<i64: 2, 128>}, {pipeline_mode = #tpu.pipeline_mode<synchronous>, transform_indices = @transform_1, window_bounds = array<i64: 256, 2>}, {pipeline_mode = #tpu.pipeline_mode<synchronous>, transform_indices = @transform_2, window_bounds = array<i64: 256, 1>}, {pipeline_mode = #tpu.pipeline_mode<synchronous>, transform_indices = @transform_3, window_bounds = array<i64: 128, 256>}, {pipeline_mode = #tpu.pipeline_mode<synchronous>, transform_indices = @transform_4, window_bounds = array<i64: 128, 1>}, {pipeline_mode = #tpu.pipeline_mode<synchronous>, transform_indices = @transform_5, window_bounds = array<i64: 64, 128>}, {pipeline_mode = #tpu.pipeline_mode<synchronous>, transform_indices = @transform_6, window_bounds = array<i64: 64, 1>}, {pipeline_mode = #tpu.pipeline_mode<synchronous>, transform_indices = @transform_7, window_bounds = array<i64: 64, 1>}, {pipeline_mode = #tpu.pipeline_mode<synchronous>, transform_indices = @transform_8, window_bounds = array<i64: 1, 1>}, {transform_indices = @transform_9, window_bounds = array<i64: 1, 128>}]} {
    %c0 = arith.constant 0 : index
    %c0_0 = arith.constant 0 : index
    %0 = vector.load %arg1[%c0, %c0_0] : memref<2x128xf32, #tpu.memory_space<vmem>>, vector<2x128xf32>
    %c0_1 = arith.constant 0 : index
    %c0_2 = arith.constant 0 : index
    %1 = vector.load %arg2[%c0_1, %c0_2] : memref<256x2xf32, #tpu.memory_space<vmem>>, vector<256x2xf32>
    %2 = vector.extract_strided_slice %1 {offsets = [0, 0], sizes = [256, 1], strides = [1, 1]} : vector<256x2xf32> to vector<256x1xf32>
    %3 = vector.extract_strided_slice %0 {offsets = [0, 0], sizes = [1, 128], strides = [1, 1]} : vector<2x128xf32> to vector<1x128xf32>
    %4 = vector.broadcast %2 : vector<256x1xf32> to vector<256x128xf32>
    %5 = vector.broadcast %3 : vector<1x128xf32> to vector<256x128xf32>
    %6 = arith.mulf %4, %5 : vector<256x128xf32>
    %7 = vector.extract_strided_slice %1 {offsets = [0, 1], sizes = [256, 1], strides = [1, 1]} : vector<256x2xf32> to vector<256x1xf32>
    %8 = vector.extract_strided_slice %0 {offsets = [1, 0], sizes = [1, 128], strides = [1, 1]} : vector<2x128xf32> to vector<1x128xf32>
    %9 = vector.broadcast %7 : vector<256x1xf32> to vector<256x128xf32>
    %10 = vector.broadcast %8 : vector<1x128xf32> to vector<256x128xf32>
    %11 = arith.mulf %9, %10 : vector<256x128xf32>
    %12 = arith.addf %6, %11 : vector<256x128xf32>
    %c0_3 = arith.constant 0 : index
    %c0_4 = arith.constant 0 : index
    %13 = vector.load %arg3[%c0_3, %c0_4] : memref<256x1xf32, #tpu.memory_space<vmem>>, vector<256x1xf32>
    %14 = vector.broadcast %13 : vector<256x1xf32> to vector<256x128xf32>
    %15 = arith.addf %12, %14 : vector<256x128xf32>
    %cst = arith.constant 0.000000e+00 : f32
    %16 = vector.broadcast %cst : f32 to vector<256x128xf32>
    %17 = arith.maximumf %15, %16 : vector<256x128xf32>
    %18 = arith.truncf %17 : vector<256x128xf32> to vector<256x128xbf16>
    %c0_5 = arith.constant 0 : index
    %c0_6 = arith.constant 0 : index
    %19 = vector.load %arg4[%c0_5, %c0_6] : memref<128x256xbf16, #tpu.memory_space<vmem>>, vector<128x256xbf16>
    %cst_7 = arith.constant dense<0.000000e+00> : vector<128x128xf32>
    %20 = tpu.matmul %19, %18, %cst_7 {dimension_numbers = #tpu.dot_dimension_numbers<[1], [0], [0], [1], [0, 0, 1, 1], [], []>} : vector<128x256xbf16>, vector<256x128xbf16>, vector<128x128xf32> -> vector<128x128xf32>
    %c0_8 = arith.constant 0 : index
    %c0_9 = arith.constant 0 : index
    %21 = vector.load %arg5[%c0_8, %c0_9] : memref<128x1xf32, #tpu.memory_space<vmem>>, vector<128x1xf32>
    %22 = vector.broadcast %21 : vector<128x1xf32> to vector<128x128xf32>
    %23 = arith.addf %20, %22 : vector<128x128xf32>
    %cst_10 = arith.constant 0.000000e+00 : f32
    %24 = vector.broadcast %cst_10 : f32 to vector<128x128xf32>
    %25 = arith.maximumf %23, %24 : vector<128x128xf32>
    %26 = arith.truncf %25 : vector<128x128xf32> to vector<128x128xbf16>
    %c0_11 = arith.constant 0 : index
    %c0_12 = arith.constant 0 : index
    %27 = vector.load %arg6[%c0_11, %c0_12] : memref<64x128xbf16, #tpu.memory_space<vmem>>, vector<64x128xbf16>
    %cst_13 = arith.constant dense<0.000000e+00> : vector<64x128xf32>
    %28 = tpu.matmul %27, %26, %cst_13 {dimension_numbers = #tpu.dot_dimension_numbers<[1], [0], [0], [1], [0, 0, 1, 1], [], []>} : vector<64x128xbf16>, vector<128x128xbf16>, vector<64x128xf32> -> vector<64x128xf32>
    %c0_14 = arith.constant 0 : index
    %c0_15 = arith.constant 0 : index
    %29 = vector.load %arg7[%c0_14, %c0_15] : memref<64x1xf32, #tpu.memory_space<vmem>>, vector<64x1xf32>
    %30 = vector.broadcast %29 : vector<64x1xf32> to vector<64x128xf32>
    %31 = arith.addf %28, %30 : vector<64x128xf32>
    %cst_16 = arith.constant 0.000000e+00 : f32
    %32 = vector.broadcast %cst_16 : f32 to vector<64x128xf32>
    %33 = arith.maximumf %31, %32 : vector<64x128xf32>
    %c0_17 = arith.constant 0 : index
    %c0_18 = arith.constant 0 : index
    %34 = vector.load %arg8[%c0_17, %c0_18] : memref<64x1xf32, #tpu.memory_space<vmem>>, vector<64x1xf32>
    %35 = vector.broadcast %34 : vector<64x1xf32> to vector<64x128xf32>
    %36 = arith.mulf %35, %33 : vector<64x128xf32>
    %cst_19 = arith.constant dense<0.000000e+00> : vector<128xf32>
    %37 = vector.multi_reduction <add>, %36, %cst_19 [0] : vector<64x128xf32> to vector<128xf32>
    %38 = vector.shape_cast %37 : vector<128xf32> to vector<1x128xf32>
    %c0_20 = arith.constant 0 : index
    %c0_21 = arith.constant 0 : index
    %39 = vector.load %arg9[%c0_20, %c0_21] : memref<1x1xf32, #tpu.memory_space<vmem>>, vector<1x1xf32>
    %40 = vector.broadcast %39 : vector<1x1xf32> to vector<1x128xf32>
    %41 = arith.addf %38, %40 : vector<1x128xf32>
    %42 = arith.negf %41 : vector<1x128xf32>
    %43 = math.exp %42 : vector<1x128xf32>
    %cst_22 = arith.constant 1.000000e+00 : f32
    %44 = vector.broadcast %cst_22 : f32 to vector<1x128xf32>
    %45 = arith.addf %44, %43 : vector<1x128xf32>
    %46 = arith.divf %44, %45 : vector<1x128xf32>
    %c0_23 = arith.constant 0 : index
    %c0_24 = arith.constant 0 : index
    %47 = vector.load %arg10[%c0_23, %c0_24] : memref<1x128xf32, #tpu.memory_space<vmem>>, vector<1x128xf32>
    tpu.vector_store %arg10[%c0_23, %c0_24], %46 {strides = array<i32>} : memref<1x128xf32, #tpu.memory_space<vmem>>, vector<1x128xf32>,
    return
  }
  func.func @transform_0(%arg0: i32) -> (i32, i32) {
    %c0_i32 = arith.constant 0 : i32
    %c0_i32_0 = arith.constant 0 : i32
    return %c0_i32, %arg0 : i32, i32
  }
  func.func @transform_1(%arg0: i32) -> (i32, i32) {
    %c0_i32 = arith.constant 0 : i32
    %c0_i32_0 = arith.constant 0 : i32
    %c0_i32_1 = arith.constant 0 : i32
    return %c0_i32, %c0_i32_0 : i32, i32
  }
  func.func @transform_2(%arg0: i32) -> (i32, i32) {
    %c0_i32 = arith.constant 0 : i32
    %c0_i32_0 = arith.constant 0 : i32
    %c0_i32_1 = arith.constant 0 : i32
    return %c0_i32, %c0_i32_0 : i32, i32
  }
  func.func @transform_3(%arg0: i32) -> (i32, i32) {
    %c0_i32 = arith.constant 0 : i32
    %c0_i32_0 = arith.constant 0 : i32
    %c0_i32_1 = arith.constant 0 : i32
    return %c0_i32, %c0_i32_0 : i32, i32
  }
  func.func @transform_4(%arg0: i32) -> (i32, i32) {
    %c0_i32 = arith.constant 0 : i32
    %c0_i32_0 = arith.constant 0 : i32
    %c0_i32_1 = arith.constant 0 : i32
    return %c0_i32, %c0_i32_0 : i32, i32
  }
  func.func @transform_5(%arg0: i32) -> (i32, i32) {
    %c0_i32 = arith.constant 0 : i32
    %c0_i32_0 = arith.constant 0 : i32
    %c0_i32_1 = arith.constant 0 : i32
    return %c0_i32, %c0_i32_0 : i32, i32
  }
  func.func @transform_6(%arg0: i32) -> (i32, i32) {
    %c0_i32 = arith.constant 0 : i32
    %c0_i32_0 = arith.constant 0 : i32
    %c0_i32_1 = arith.constant 0 : i32
    return %c0_i32, %c0_i32_0 : i32, i32
  }
  func.func @transform_7(%arg0: i32) -> (i32, i32) {
    %c0_i32 = arith.constant 0 : i32
    %c0_i32_0 = arith.constant 0 : i32
    %c0_i32_1 = arith.constant 0 : i32
    return %c0_i32, %c0_i32_0 : i32, i32
  }
  func.func @transform_8(%arg0: i32) -> (i32, i32) {
    %c0_i32 = arith.constant 0 : i32
    %c0_i32_0 = arith.constant 0 : i32
    %c0_i32_1 = arith.constant 0 : i32
    return %c0_i32, %c0_i32_0 : i32, i32
  }
  func.func @transform_9(%arg0: i32) -> (i32, i32) {
    %c0_i32 = arith.constant 0 : i32
    %c0_i32_0 = arith.constant 0 : i32
    return %c0_i32, %arg0 : i32, i32
  }
}

</mosaic_0001>

<llo_original>
// kernel: tpu_custom_call.1
$region0: #{tpu_custom_call.1}
  #allocation0 [shape = 'u32[]', space=smem, size = 0x4, offset = 0x4, fixed_abs, tag = 'smem constant byte address 0x4 - core index']
  #allocation1 [shape = 'u32[144,128]{1,0:T(1,128)}', space=vmem, size = 0x12000, scoped, tag = 'internal scratch']
  #allocation2 [shape = 'f32[1,1]{1,0:T(1,128)S(1)}', space=vmem, size = 0x200, scoped, tag = 'scoped memory for tpu_custom_call.1']
  %s0 = inlined_call_operand.hbm [shape: f32[2,128], index: 0, kind: input, shape index: {}]
  %s1 = inlined_call_operand.hbm [shape: f32[256,2], index: 1, kind: input, shape index: {}]
  %s2 = inlined_call_operand.hbm [shape: f32[256,1], index: 2, kind: input, shape index: {}]
  %s3 = inlined_call_operand.hbm [shape: bf16[128,256], index: 3, kind: input, shape index: {}]
  %s4 = inlined_call_operand.hbm [shape: f32[128,1], index: 4, kind: input, shape index: {}]
  %s5 = inlined_call_operand.hbm [shape: bf16[64,128], index: 5, kind: input, shape index: {}]
  %s6 = inlined_call_operand.hbm [shape: f32[64,1], index: 6, kind: input, shape index: {}]
  %s7 = inlined_call_operand.hbm [shape: f32[64,1], index: 7, kind: input, shape index: {}]
  %s8 = inlined_call_operand.<no memory space> [shape: f32[1,1], index: 8, kind: input, shape index: {}]
  %s9 = inlined_call_operand.hbm [shape: f32[1,128], index: 9, kind: output, shape index: {}]
  %s10 = sld [smem:[#allocation0]]
  $region78: #{tpu_custom_call.1} parent=0
    _
  %s12 = ssub.s32 1, %s10
  %s13 = scalar_select 0, %s12, %s10
  %v14 = vstv %s8
  %15 = vst [vmem:[#allocation2] sm:$0x1] %v14
  $region1: #{tpu_custom_call.1} parent=0
    #allocation3 [shape = 'u8[1024]{0}', space=vmem, size = 0x400, scoped, tag = 'input window, operand 0, single buffered']
    #allocation4 [shape = 's32[1]{0}', space=sflag, size = 0x4, scoped, tag = 'scoped memory for tpu_custom_call.1']
    #allocation5 [shape = 's32[1]{0}', space=sflag, size = 0x4, scoped, tag = 'scoped memory for tpu_custom_call.1']
    #allocation6 [shape = 'u8[131072]{0}', space=vmem, size = 0x20000, scoped, tag = 'input window, operand 1, single buffered']
    #allocation7 [shape = 's32[1]{0}', space=sflag, size = 0x4, scoped, tag = 'scoped memory for tpu_custom_call.1']
    #allocation8 [shape = 'u8[131072]{0}', space=vmem, size = 0x20000, scoped, tag = 'input window, operand 2, single buffered']
    #allocation9 [shape = 'u8[65536]{0}', space=vmem, size = 0x10000, scoped, tag = 'input window, operand 3, single buffered']
    #allocation10 [shape = 's32[1]{0}', space=sflag, size = 0x4, scoped, tag = 'scoped memory for tpu_custom_call.1']
    #allocation11 [shape = 'u8[65536]{0}', space=vmem, size = 0x10000, scoped, tag = 'input window, operand 4, single buffered']
    #allocation12 [shape = 'u8[16384]{0}', space=vmem, size = 0x4000, scoped, tag = 'input window, operand 5, single buffered']
    #allocation13 [shape = 's32[1]{0}', space=sflag, size = 0x4, scoped, tag = 'scoped memory for tpu_custom_call.1']
    #allocation14 [shape = 'u8[32768]{0}', space=vmem, size = 0x8000, scoped, tag = 'input window, operand 6, single buffered']
    #allocation15 [shape = 'u8[32768]{0}', space=vmem, size = 0x8000, scoped, tag = 'input window, operand 7, single buffered']
    #allocation16 [shape = 's32[1]{0}', space=sflag, size = 0x4, scoped, tag = 'scoped memory for tpu_custom_call.1']
    #allocation17 [shape = 'u8[512]{0}', space=vmem, size = 0x400, scoped, tag = 'output window, operand 0, single buffered']
    %16 = vsyncpa [#allocation4], 0
    %17 = vsyncpa [#allocation7], 0
    %18 = vsyncpa [#allocation10], 0
    %19 = vsyncpa [#allocation13], 0
    %20 = vsyncpa [#allocation16], 0
    %21 = vsyncpa [#allocation5], 0
    // Predicated region
    $region2: #{tpu_custom_call.1} parent=1 // pred_check
      _
    $region3: #{tpu_custom_call.1} parent=1 // pred_check_branch
      %23 = sbr.rel (0) target = $region5
    $region4: #{tpu_custom_call.1} parent=1 // pred_region
      %s25 = ssub.s32 32, 32
      %26 = vsyncadd [#allocation4], %s25
      %s28 = sshll.u32 [#allocation3], 4
      %s29 = int_to_ptr.vmem [resolvable:$true] %s28
      %31 = dma.hbm_to_vmem [thread:$0]  %s0, 32, %s29, [#allocation4]
    $region5: #{tpu_custom_call.1} parent=1 // pred_fallthru
      _
    // Predicated region
    $region6: #{tpu_custom_call.1} parent=1 // pred_check
      _
    $region7: #{tpu_custom_call.1} parent=1 // pred_check_branch
      %33 = sbr.rel (0) target = $region9
    $region8: #{tpu_custom_call.1} parent=1 // pred_region
      %s35 = ssub.s32 4096, 4096
      %36 = vsyncadd [#allocation7], %s35
      %s37 = sshll.u32 [#allocation6], 4
      %s38 = int_to_ptr.vmem [resolvable:$true] %s37
      %43 = dma.hbm_to_vmem [thread:$0]  %s1, 4096, %s38, [#allocation7], 128, 128, 8
    $region9: #{tpu_custom_call.1} parent=1 // pred_fallthru
      _
    // Predicated region
    $region10: #{tpu_custom_call.1} parent=1 // pred_check
      _
    $region11: #{tpu_custom_call.1} parent=1 // pred_check_branch
      %45 = sbr.rel (0) target = $region13
    $region12: #{tpu_custom_call.1} parent=1 // pred_region
      %s47 = ssub.s32 4096, 4096
      %48 = vsyncadd [#allocation7], %s47
      %s49 = sshll.u32 [#allocation8], 4
      %s50 = int_to_ptr.vmem [resolvable:$true] %s49
      %55 = dma.hbm_to_vmem [thread:$0]  %s2, 4096, %s50, [#allocation7], 128, 128, 8
    $region13: #{tpu_custom_call.1} parent=1 // pred_fallthru
      _
    // Predicated region
    $region14: #{tpu_custom_call.1} parent=1 // pred_check
      _
    $region15: #{tpu_custom_call.1} parent=1 // pred_check_branch
      %57 = sbr.rel (0) target = $region17
    $region16: #{tpu_custom_call.1} parent=1 // pred_region
      %s59 = ssub.s32 2048, 2048
      %60 = vsyncadd [#allocation10], %s59
      %s61 = sshll.u32 [#allocation9], 4
      %s62 = int_to_ptr.vmem [resolvable:$true] %s61
      %67 = dma.hbm_to_vmem [thread:$0]  %s3, 2048, %s62, [#allocation10], 128, 128, 8
    $region17: #{tpu_custom_call.1} parent=1 // pred_fallthru
      _
    // Predicated region
    $region18: #{tpu_custom_call.1} parent=1 // pred_check
      _
    $region19: #{tpu_custom_call.1} parent=1 // pred_check_branch
      %69 = sbr.rel (0) target = $region21
    $region20: #{tpu_custom_call.1} parent=1 // pred_region
      %s71 = ssub.s32 2048, 2048
      %72 = vsyncadd [#allocation10], %s71
      %s73 = sshll.u32 [#allocation11], 4
      %s74 = int_to_ptr.vmem [resolvable:$true] %s73
      %79 = dma.hbm_to_vmem [thread:$0]  %s4, 2048, %s74, [#allocation10], 128, 128, 8
    $region21: #{tpu_custom_call.1} parent=1 // pred_fallthru
      _
    // Predicated region
    $region22: #{tpu_custom_call.1} parent=1 // pred_check
      _
    $region23: #{tpu_custom_call.1} parent=1 // pred_check_branch
      %81 = sbr.rel (0) target = $region25
    $region24: #{tpu_custom_call.1} parent=1 // pred_region
      %s83 = ssub.s32 512, 512
      %84 = vsyncadd [#allocation13], %s83
      %s85 = sshll.u32 [#allocation12], 4
      %s86 = int_to_ptr.vmem [resolvable:$true] %s85
      %91 = dma.hbm_to_vmem [thread:$0]  %s5, 512, %s86, [#allocation13], 64, 64, 4
    $region25: #{tpu_custom_call.1} parent=1 // pred_fallthru
      _
    // Predicated region
    $region26: #{tpu_custom_call.1} parent=1 // pred_check
      _
    $region27: #{tpu_custom_call.1} parent=1 // pred_check_branch
      %93 = sbr.rel (0) target = $region29
    $region28: #{tpu_custom_call.1} parent=1 // pred_region
      %s95 = ssub.s32 1024, 1024
      %96 = vsyncadd [#allocation13], %s95
      %s97 = sshll.u32 [#allocation14], 4
      %s98 = int_to_ptr.vmem [resolvable:$true] %s97
      %103 = dma.hbm_to_vmem [thread:$0]  %s6, 1024, %s98, [#allocation13], 128, 128, 8
    $region29: #{tpu_custom_call.1} parent=1 // pred_fallthru
      _
    // Predicated region
    $region30: #{tpu_custom_call.1} parent=1 // pred_check
      _
    $region31: #{tpu_custom_call.1} parent=1 // pred_check_branch
      %105 = sbr.rel (0) target = $region33
    $region32: #{tpu_custom_call.1} parent=1 // pred_region
      %s107 = ssub.s32 1024, 1024
      %108 = vsyncadd [#allocation16], %s107
      %s109 = sshll.u32 [#allocation15], 4
      %s110 = int_to_ptr.vmem [resolvable:$true] %s109
      %115 = dma.hbm_to_vmem [thread:$0]  %s7, 1024, %s110, [#allocation16], 128, 128, 8
    $region33: #{tpu_custom_call.1} parent=1 // pred_fallthru
      _
    // Predicated region
    $region34: #{tpu_custom_call.1} parent=1 // pred_check
      _
    $region35: #{tpu_custom_call.1} parent=1 // pred_check_branch
      %117 = sbr.rel (0) target = $region37
    $region36: #{tpu_custom_call.1} parent=1 // pred_region
      _
    $region37: #{tpu_custom_call.1} parent=1 // pred_fallthru
      _
    // Predicated region
    $region38: #{tpu_custom_call.1} parent=1 // pred_check
      _
    $region39: #{tpu_custom_call.1} parent=1 // pred_check_branch
      %119 = sbr.rel (0) target = $region41
    $region40: #{tpu_custom_call.1} parent=1 // pred_region
      %120 = dma.done [#allocation4], 32
    $region41: #{tpu_custom_call.1} parent=1 // pred_fallthru
      _
    // Predicated region
    $region42: #{tpu_custom_call.1} parent=1 // pred_check
      _
    $region43: #{tpu_custom_call.1} parent=1 // pred_check_branch
      %122 = sbr.rel (0) target = $region45
    $region44: #{tpu_custom_call.1} parent=1 // pred_region
      %123 = dma.done [#allocation7], 4096
    $region45: #{tpu_custom_call.1} parent=1 // pred_fallthru
      _
    // Predicated region
    $region46: #{tpu_custom_call.1} parent=1 // pred_check
      _
    $region47: #{tpu_custom_call.1} parent=1 // pred_check_branch
      %125 = sbr.rel (0) target = $region49
    $region48: #{tpu_custom_call.1} parent=1 // pred_region
      %126 = dma.done [#allocation7], 4096
    $region49: #{tpu_custom_call.1} parent=1 // pred_fallthru
      _
    // Predicated region
    $region50: #{tpu_custom_call.1} parent=1 // pred_check
      _
    $region51: #{tpu_custom_call.1} parent=1 // pred_check_branch
      %128 = sbr.rel (0) target = $region53
    $region52: #{tpu_custom_call.1} parent=1 // pred_region
      %129 = dma.done [#allocation10], 2048
    $region53: #{tpu_custom_call.1} parent=1 // pred_fallthru
      _
    // Predicated region
    $region54: #{tpu_custom_call.1} parent=1 // pred_check
      _
    $region55: #{tpu_custom_call.1} parent=1 // pred_check_branch
      %131 = sbr.rel (0) target = $region57
    $region56: #{tpu_custom_call.1} parent=1 // pred_region
      %132 = dma.done [#allocation10], 2048
    $region57: #{tpu_custom_call.1} parent=1 // pred_fallthru
      _
    // Predicated region
    $region58: #{tpu_custom_call.1} parent=1 // pred_check
      _
    $region59: #{tpu_custom_call.1} parent=1 // pred_check_branch
      %134 = sbr.rel (0) target = $region61
    $region60: #{tpu_custom_call.1} parent=1 // pred_region
      %135 = dma.done [#allocation13], 512
    $region61: #{tpu_custom_call.1} parent=1 // pred_fallthru
      _
    // Predicated region
    $region62: #{tpu_custom_call.1} parent=1 // pred_check
      _
    $region63: #{tpu_custom_call.1} parent=1 // pred_check_branch
      %137 = sbr.rel (0) target = $region65
    $region64: #{tpu_custom_call.1} parent=1 // pred_region
      %138 = dma.done [#allocation13], 1024
    $region65: #{tpu_custom_call.1} parent=1 // pred_fallthru
      _
    // Predicated region
    $region66: #{tpu_custom_call.1} parent=1 // pred_check
      _
    $region67: #{tpu_custom_call.1} parent=1 // pred_check_branch
      %140 = sbr.rel (0) target = $region69
    $region68: #{tpu_custom_call.1} parent=1 // pred_region
      %141 = dma.done [#allocation16], 1024
    $region69: #{tpu_custom_call.1} parent=1 // pred_fallthru
      _
    %v143 = vld [vmem:[#allocation3] sm:$0x3]
    %v144 = vld [vmem:[#allocation6] sm:$0xff]
    %v145 = vld [vmem:[#allocation6 + $0x8] sm:$0xff]
    %v146 = vld [vmem:[#allocation6 + $0x10] sm:$0xff]
    %v147 = vld [vmem:[#allocation6 + $0x18] sm:$0xff]
    %v148 = vld [vmem:[#allocation6 + $0x20] sm:$0xff]
    %v149 = vld [vmem:[#allocation6 + $0x28] sm:$0xff]
    %v150 = vld [vmem:[#allocation6 + $0x30] sm:$0xff]
    %v151 = vld [vmem:[#allocation6 + $0x38] sm:$0xff]
    %v152 = vld [vmem:[#allocation6 + $0x40] sm:$0xff]
    %v153 = vld [vmem:[#allocation6 + $0x48] sm:$0xff]
    %v154 = vld [vmem:[#allocation6 + $0x50] sm:$0xff]
    %v155 = vld [vmem:[#allocation6 + $0x58] sm:$0xff]
    %v156 = vld [vmem:[#allocation6 + $0x60] sm:$0xff]
    %v157 = vld [vmem:[#allocation6 + $0x68] sm:$0xff]
    %v158 = vld [vmem:[#allocation6 + $0x70] sm:$0xff]
    %v159 = vld [vmem:[#allocation6 + $0x78] sm:$0xff]
    %v160 = vld [vmem:[#allocation6 + $0x80] sm:$0xff]
    %v161 = vld [vmem:[#allocation6 + $0x88] sm:$0xff]
    %v162 = vld [vmem:[#allocation6 + $0x90] sm:$0xff]
    %v163 = vld [vmem:[#allocation6 + $0x98] sm:$0xff]
    %v164 = vld [vmem:[#allocation6 + $0xa0] sm:$0xff]
    %v165 = vld [vmem:[#allocation6 + $0xa8] sm:$0xff]
    %v166 = vld [vmem:[#allocation6 + $0xb0] sm:$0xff]
    %v167 = vld [vmem:[#allocation6 + $0xb8] sm:$0xff]
    %v168 = vld [vmem:[#allocation6 + $0xc0] sm:$0xff]
    %v169 = vld [vmem:[#allocation6 + $0xc8] sm:$0xff]
    %v170 = vld [vmem:[#allocation6 + $0xd0] sm:$0xff]
    %v171 = vld [vmem:[#allocation6 + $0xd8] sm:$0xff]
    %v172 = vld [vmem:[#allocation6 + $0xe0] sm:$0xff]
    %v173 = vld [vmem:[#allocation6 + $0xe8] sm:$0xff]
    %v174 = vld [vmem:[#allocation6 + $0xf0] sm:$0xff]
    %v175 = vld [vmem:[#allocation6 + $0xf8] sm:$0xff]
    %177 = vset.pattern.permute.xlu0 0
    %178 = vperm.xlu0 %177, %v144
    %v179 = vpop.permute.xlu0 %178
    %182 = vset.pattern.permute.xlu0 0
    %183 = vperm.xlu0 %182, %v145
    %v184 = vpop.permute.xlu0 %183
    %187 = vset.pattern.permute.xlu0 0
    %188 = vperm.xlu0 %187, %v146
    %v189 = vpop.permute.xlu0 %188
    %192 = vset.pattern.permute.xlu0 0
    %193 = vperm.xlu0 %192, %v147
    %v194 = vpop.permute.xlu0 %193
    %197 = vset.pattern.permute.xlu0 0
    %198 = vperm.xlu0 %197, %v148
    %v199 = vpop.permute.xlu0 %198
    %202 = vset.pattern.permute.xlu0 0
    %203 = vperm.xlu0 %202, %v149
    %v204 = vpop.permute.xlu0 %203
    %207 = vset.pattern.permute.xlu0 0
    %208 = vperm.xlu0 %207, %v150
    %v209 = vpop.permute.xlu0 %208
    %212 = vset.pattern.permute.xlu0 0
    %213 = vperm.xlu0 %212, %v151
    %v214 = vpop.permute.xlu0 %213
    %217 = vset.pattern.permute.xlu0 0
    %218 = vperm.xlu0 %217, %v152
    %v219 = vpop.permute.xlu0 %218
    %222 = vset.pattern.permute.xlu0 0
    %223 = vperm.xlu0 %222, %v153
    %v224 = vpop.permute.xlu0 %223
    %227 = vset.pattern.permute.xlu0 0
    %228 = vperm.xlu0 %227, %v154
    %v229 = vpop.permute.xlu0 %228
    %232 = vset.pattern.permute.xlu0 0
    %233 = vperm.xlu0 %232, %v155
    %v234 = vpop.permute.xlu0 %233
    %237 = vset.pattern.permute.xlu0 0
    %238 = vperm.xlu0 %237, %v156
    %v239 = vpop.permute.xlu0 %238
    %242 = vset.pattern.permute.xlu0 0
    %243 = vperm.xlu0 %242, %v157
    %v244 = vpop.permute.xlu0 %243
    %247 = vset.pattern.permute.xlu0 0
    %248 = vperm.xlu0 %247, %v158
    %v249 = vpop.permute.xlu0 %248
    %252 = vset.pattern.permute.xlu0 0
    %253 = vperm.xlu0 %252, %v159
    %v254 = vpop.permute.xlu0 %253
    %257 = vset.pattern.permute.xlu0 0
    %258 = vperm.xlu0 %257, %v160
    %v259 = vpop.permute.xlu0 %258
    %262 = vset.pattern.permute.xlu0 0
    %263 = vperm.xlu0 %262, %v161
    %v264 = vpop.permute.xlu0 %263
    %267 = vset.pattern.permute.xlu0 0
    %268 = vperm.xlu0 %267, %v162
    %v269 = vpop.permute.xlu0 %268
    %272 = vset.pattern.permute.xlu0 0
    %273 = vperm.xlu0 %272, %v163
    %v274 = vpop.permute.xlu0 %273
    %277 = vset.pattern.permute.xlu0 0
    %278 = vperm.xlu0 %277, %v164
    %v279 = vpop.permute.xlu0 %278
    %282 = vset.pattern.permute.xlu0 0
    %283 = vperm.xlu0 %282, %v165
    %v284 = vpop.permute.xlu0 %283
    %287 = vset.pattern.permute.xlu0 0
    %288 = vperm.xlu0 %287, %v166
    %v289 = vpop.permute.xlu0 %288
    %292 = vset.pattern.permute.xlu0 0
    %293 = vperm.xlu0 %292, %v167
    %v294 = vpop.permute.xlu0 %293
    %297 = vset.pattern.permute.xlu0 0
    %298 = vperm.xlu0 %297, %v168
    %v299 = vpop.permute.xlu0 %298
    %302 = vset.pattern.permute.xlu0 0
    %303 = vperm.xlu0 %302, %v169
    %v304 = vpop.permute.xlu0 %303
    %307 = vset.pattern.permute.xlu0 0
    %308 = vperm.xlu0 %307, %v170
    %v309 = vpop.permute.xlu0 %308
    %312 = vset.pattern.permute.xlu0 0
    %313 = vperm.xlu0 %312, %v171
    %v314 = vpop.permute.xlu0 %313
    %317 = vset.pattern.permute.xlu0 0
    %318 = vperm.xlu0 %317, %v172
    %v319 = vpop.permute.xlu0 %318
    %322 = vset.pattern.permute.xlu0 0
    %323 = vperm.xlu0 %322, %v173
    %v324 = vpop.permute.xlu0 %323
    %327 = vset.pattern.permute.xlu0 0
    %328 = vperm.xlu0 %327, %v174
    %v329 = vpop.permute.xlu0 %328
    %332 = vset.pattern.permute.xlu0 0
    %333 = vperm.xlu0 %332, %v175
    %v334 = vpop.permute.xlu0 %333
    %v336 = vlaneseq
    %v337 = vshrl.u32 %v336, 7
    %v338 = vsub.s32 0, %v337
    %v339 = vrot.slane %v143, %v338
    %v340 = vmul.f32 %v179, %v339
    %v341 = vmul.f32 %v184, %v339
    %v342 = vmul.f32 %v189, %v339
    %v343 = vmul.f32 %v194, %v339
    %v344 = vmul.f32 %v199, %v339
    %v345 = vmul.f32 %v204, %v339
    %v346 = vmul.f32 %v209, %v339
    %v347 = vmul.f32 %v214, %v339
    %v348 = vmul.f32 %v219, %v339
    %v349 = vmul.f32 %v224, %v339
    %v350 = vmul.f32 %v229, %v339
    %v351 = vmul.f32 %v234, %v339
    %v352 = vmul.f32 %v239, %v339
    %v353 = vmul.f32 %v244, %v339
    %v354 = vmul.f32 %v249, %v339
    %v355 = vmul.f32 %v254, %v339
    %v356 = vmul.f32 %v259, %v339
    %v357 = vmul.f32 %v264, %v339
    %v358 = vmul.f32 %v269, %v339
    %v359 = vmul.f32 %v274, %v339
    %v360 = vmul.f32 %v279, %v339
    %v361 = vmul.f32 %v284, %v339
    %v362 = vmul.f32 %v289, %v339
    %v363 = vmul.f32 %v294, %v339
    %v364 = vmul.f32 %v299, %v339
    %v365 = vmul.f32 %v304, %v339
    %v366 = vmul.f32 %v309, %v339
    %v367 = vmul.f32 %v314, %v339
    %v368 = vmul.f32 %v319, %v339
    %v369 = vmul.f32 %v324, %v339
    %v370 = vmul.f32 %v329, %v339
    %v371 = vmul.f32 %v334, %v339
    %372 = vset.pattern.permute.xlu0 1
    %373 = vperm.xlu0 %372, %v144
    %v374 = vpop.permute.xlu0 %373
    %376 = vset.pattern.permute.xlu0 1
    %377 = vperm.xlu0 %376, %v145
    %v378 = vpop.permute.xlu0 %377
    %380 = vset.pattern.permute.xlu0 1
    %381 = vperm.xlu0 %380, %v146
    %v382 = vpop.permute.xlu0 %381
    %384 = vset.pattern.permute.xlu0 1
    %385 = vperm.xlu0 %384, %v147
    %v386 = vpop.permute.xlu0 %385
    %388 = vset.pattern.permute.xlu0 1
    %389 = vperm.xlu0 %388, %v148
    %v390 = vpop.permute.xlu0 %389
    %392 = vset.pattern.permute.xlu0 1
    %393 = vperm.xlu0 %392, %v149
    %v394 = vpop.permute.xlu0 %393
    %396 = vset.pattern.permute.xlu0 1
    %397 = vperm.xlu0 %396, %v150
    %v398 = vpop.permute.xlu0 %397
    %400 = vset.pattern.permute.xlu0 1
    %401 = vperm.xlu0 %400, %v151
    %v402 = vpop.permute.xlu0 %401
    %404 = vset.pattern.permute.xlu0 1
    %405 = vperm.xlu0 %404, %v152
    %v406 = vpop.permute.xlu0 %405
    %408 = vset.pattern.permute.xlu0 1
    %409 = vperm.xlu0 %408, %v153
    %v410 = vpop.permute.xlu0 %409
    %412 = vset.pattern.permute.xlu0 1
    %413 = vperm.xlu0 %412, %v154
    %v414 = vpop.permute.xlu0 %413
    %416 = vset.pattern.permute.xlu0 1
    %417 = vperm.xlu0 %416, %v155
    %v418 = vpop.permute.xlu0 %417
    %420 = vset.pattern.permute.xlu0 1
    %421 = vperm.xlu0 %420, %v156
    %v422 = vpop.permute.xlu0 %421
    %424 = vset.pattern.permute.xlu0 1
    %425 = vperm.xlu0 %424, %v157
    %v426 = vpop.permute.xlu0 %425
    %428 = vset.pattern.permute.xlu0 1
    %429 = vperm.xlu0 %428, %v158
    %v430 = vpop.permute.xlu0 %429
    %432 = vset.pattern.permute.xlu0 1
    %433 = vperm.xlu0 %432, %v159
    %v434 = vpop.permute.xlu0 %433
    %436 = vset.pattern.permute.xlu0 1
    %437 = vperm.xlu0 %436, %v160
    %v438 = vpop.permute.xlu0 %437
    %440 = vset.pattern.permute.xlu0 1
    %441 = vperm.xlu0 %440, %v161
    %v442 = vpop.permute.xlu0 %441
    %444 = vset.pattern.permute.xlu0 1
    %445 = vperm.xlu0 %444, %v162
    %v446 = vpop.permute.xlu0 %445
    %448 = vset.pattern.permute.xlu0 1
    %449 = vperm.xlu0 %448, %v163
    %v450 = vpop.permute.xlu0 %449
    %452 = vset.pattern.permute.xlu0 1
    %453 = vperm.xlu0 %452, %v164
    %v454 = vpop.permute.xlu0 %453
    %456 = vset.pattern.permute.xlu0 1
    %457 = vperm.xlu0 %456, %v165
    %v458 = vpop.permute.xlu0 %457
    %460 = vset.pattern.permute.xlu0 1
    %461 = vperm.xlu0 %460, %v166
    %v462 = vpop.permute.xlu0 %461
    %464 = vset.pattern.permute.xlu0 1
    %465 = vperm.xlu0 %464, %v167
    %v466 = vpop.permute.xlu0 %465
    %468 = vset.pattern.permute.xlu0 1
    %469 = vperm.xlu0 %468, %v168
    %v470 = vpop.permute.xlu0 %469
    %472 = vset.pattern.permute.xlu0 1
    %473 = vperm.xlu0 %472, %v169
    %v474 = vpop.permute.xlu0 %473
    %476 = vset.pattern.permute.xlu0 1
    %477 = vperm.xlu0 %476, %v170
    %v478 = vpop.permute.xlu0 %477
    %480 = vset.pattern.permute.xlu0 1
    %481 = vperm.xlu0 %480, %v171
    %v482 = vpop.permute.xlu0 %481
    %484 = vset.pattern.permute.xlu0 1
    %485 = vperm.xlu0 %484, %v172
    %v486 = vpop.permute.xlu0 %485
    %488 = vset.pattern.permute.xlu0 1
    %489 = vperm.xlu0 %488, %v173
    %v490 = vpop.permute.xlu0 %489
    %492 = vset.pattern.permute.xlu0 1
    %493 = vperm.xlu0 %492, %v174
    %v494 = vpop.permute.xlu0 %493
    %496 = vset.pattern.permute.xlu0 1
    %497 = vperm.xlu0 %496, %v175
    %v498 = vpop.permute.xlu0 %497
    %v500 = vlaneseq
    %v501 = vshrl.u32 %v500, 7
    %v502 = vsub.s32 1, %v501
    %v503 = vrot.slane %v143, %v502
    %v504 = vmul.f32 %v374, %v503
    %v505 = vmul.f32 %v378, %v503
    %v506 = vmul.f32 %v382, %v503
    %v507 = vmul.f32 %v386, %v503
    %v508 = vmul.f32 %v390, %v503
    %v509 = vmul.f32 %v394, %v503
    %v510 = vmul.f32 %v398, %v503
    %v511 = vmul.f32 %v402, %v503
    %v512 = vmul.f32 %v406, %v503
    %v513 = vmul.f32 %v410, %v503
    %v514 = vmul.f32 %v414, %v503
    %v515 = vmul.f32 %v418, %v503
    %v516 = vmul.f32 %v422, %v503
    %v517 = vmul.f32 %v426, %v503
    %v518 = vmul.f32 %v430, %v503
    %v519 = vmul.f32 %v434, %v503
    %v520 = vmul.f32 %v438, %v503
    %v521 = vmul.f32 %v442, %v503
    %v522 = vmul.f32 %v446, %v503
    %v523 = vmul.f32 %v450, %v503
    %v524 = vmul.f32 %v454, %v503
    %v525 = vmul.f32 %v458, %v503
    %v526 = vmul.f32 %v462, %v503
    %v527 = vmul.f32 %v466, %v503
    %v528 = vmul.f32 %v470, %v503
    %v529 = vmul.f32 %v474, %v503
    %v530 = vmul.f32 %v478, %v503
    %v531 = vmul.f32 %v482, %v503
    %v532 = vmul.f32 %v486, %v503
    %v533 = vmul.f32 %v490, %v503
    %v534 = vmul.f32 %v494, %v503
    %v535 = vmul.f32 %v498, %v503
    %v536 = vadd.f32 %v340, %v504
    %v537 = vadd.f32 %v341, %v505
    %v538 = vadd.f32 %v342, %v506
    %v539 = vadd.f32 %v343, %v507
    %v540 = vadd.f32 %v344, %v508
    %v541 = vadd.f32 %v345, %v509
    %v542 = vadd.f32 %v346, %v510
    %v543 = vadd.f32 %v347, %v511
    %v544 = vadd.f32 %v348, %v512
    %v545 = vadd.f32 %v349, %v513
    %v546 = vadd.f32 %v350, %v514
    %v547 = vadd.f32 %v351, %v515
    %v548 = vadd.f32 %v352, %v516
    %v549 = vadd.f32 %v353, %v517
    %v550 = vadd.f32 %v354, %v518
    %v551 = vadd.f32 %v355, %v519
    %v552 = vadd.f32 %v356, %v520
    %v553 = vadd.f32 %v357, %v521
    %v554 = vadd.f32 %v358, %v522
    %v555 = vadd.f32 %v359, %v523
    %v556 = vadd.f32 %v360, %v524
    %v557 = vadd.f32 %v361, %v525
    %v558 = vadd.f32 %v362, %v526
    %v559 = vadd.f32 %v363, %v527
    %v560 = vadd.f32 %v364, %v528
    %v561 = vadd.f32 %v365, %v529
    %v562 = vadd.f32 %v366, %v530
    %v563 = vadd.f32 %v367, %v531
    %v564 = vadd.f32 %v368, %v532
    %v565 = vadd.f32 %v369, %v533
    %v566 = vadd.f32 %v370, %v534
    %v567 = vadd.f32 %v371, %v535
    %v568 = vld [vmem:[#allocation8] sm:$0xff]
    %v569 = vld [vmem:[#allocation8 + $0x8] sm:$0xff]
    %v570 = vld [vmem:[#allocation8 + $0x10] sm:$0xff]
    %v571 = vld [vmem:[#allocation8 + $0x18] sm:$0xff]
    %v572 = vld [vmem:[#allocation8 + $0x20] sm:$0xff]
    %v573 = vld [vmem:[#allocation8 + $0x28] sm:$0xff]
    %v574 = vld [vmem:[#allocation8 + $0x30] sm:$0xff]
    %v575 = vld [vmem:[#allocation8 + $0x38] sm:$0xff]
    %v576 = vld [vmem:[#allocation8 + $0x40] sm:$0xff]
    %v577 = vld [vmem:[#allocation8 + $0x48] sm:$0xff]
    %v578 = vld [vmem:[#allocation8 + $0x50] sm:$0xff]
    %v579 = vld [vmem:[#allocation8 + $0x58] sm:$0xff]
    %v580 = vld [vmem:[#allocation8 + $0x60] sm:$0xff]
    %v581 = vld [vmem:[#allocation8 + $0x68] sm:$0xff]
    %v582 = vld [vmem:[#allocation8 + $0x70] sm:$0xff]
    %v583 = vld [vmem:[#allocation8 + $0x78] sm:$0xff]
    %v584 = vld [vmem:[#allocation8 + $0x80] sm:$0xff]
    %v585 = vld [vmem:[#allocation8 + $0x88] sm:$0xff]
    %v586 = vld [vmem:[#allocation8 + $0x90] sm:$0xff]
    %v587 = vld [vmem:[#allocation8 + $0x98] sm:$0xff]
    %v588 = vld [vmem:[#allocation8 + $0xa0] sm:$0xff]
    %v589 = vld [vmem:[#allocation8 + $0xa8] sm:$0xff]
    %v590 = vld [vmem:[#allocation8 + $0xb0] sm:$0xff]
    %v591 = vld [vmem:[#allocation8 + $0xb8] sm:$0xff]
    %v592 = vld [vmem:[#allocation8 + $0xc0] sm:$0xff]
    %v593 = vld [vmem:[#allocation8 + $0xc8] sm:$0xff]
    %v594 = vld [vmem:[#allocation8 + $0xd0] sm:$0xff]
    %v595 = vld [vmem:[#allocation8 + $0xd8] sm:$0xff]
    %v596 = vld [vmem:[#allocation8 + $0xe0] sm:$0xff]
    %v597 = vld [vmem:[#allocation8 + $0xe8] sm:$0xff]
    %v598 = vld [vmem:[#allocation8 + $0xf0] sm:$0xff]
    %v599 = vld [vmem:[#allocation8 + $0xf8] sm:$0xff]
    %601 = vset.pattern.permute.xlu0 0
    %602 = vperm.xlu0 %601, %v568
    %v603 = vpop.permute.xlu0 %602
    %606 = vset.pattern.permute.xlu0 0
    %607 = vperm.xlu0 %606, %v569
    %v608 = vpop.permute.xlu0 %607
    %611 = vset.pattern.permute.xlu0 0
    %612 = vperm.xlu0 %611, %v570
    %v613 = vpop.permute.xlu0 %612
    %616 = vset.pattern.permute.xlu0 0
    %617 = vperm.xlu0 %616, %v571
    %v618 = vpop.permute.xlu0 %617
    %621 = vset.pattern.permute.xlu0 0
    %622 = vperm.xlu0 %621, %v572
    %v623 = vpop.permute.xlu0 %622
    %626 = vset.pattern.permute.xlu0 0
    %627 = vperm.xlu0 %626, %v573
    %v628 = vpop.permute.xlu0 %627
    %631 = vset.pattern.permute.xlu0 0
    %632 = vperm.xlu0 %631, %v574
    %v633 = vpop.permute.xlu0 %632
    %636 = vset.pattern.permute.xlu0 0
    %637 = vperm.xlu0 %636, %v575
    %v638 = vpop.permute.xlu0 %637
    %641 = vset.pattern.permute.xlu0 0
    %642 = vperm.xlu0 %641, %v576
    %v643 = vpop.permute.xlu0 %642
    %646 = vset.pattern.permute.xlu0 0
    %647 = vperm.xlu0 %646, %v577
    %v648 = vpop.permute.xlu0 %647
    %651 = vset.pattern.permute.xlu0 0
    %652 = vperm.xlu0 %651, %v578
    %v653 = vpop.permute.xlu0 %652
    %656 = vset.pattern.permute.xlu0 0
    %657 = vperm.xlu0 %656, %v579
    %v658 = vpop.permute.xlu0 %657
    %661 = vset.pattern.permute.xlu0 0
    %662 = vperm.xlu0 %661, %v580
    %v663 = vpop.permute.xlu0 %662
    %666 = vset.pattern.permute.xlu0 0
    %667 = vperm.xlu0 %666, %v581
    %v668 = vpop.permute.xlu0 %667
    %671 = vset.pattern.permute.xlu0 0
    %672 = vperm.xlu0 %671, %v582
    %v673 = vpop.permute.xlu0 %672
    %676 = vset.pattern.permute.xlu0 0
    %677 = vperm.xlu0 %676, %v583
    %v678 = vpop.permute.xlu0 %677
    %681 = vset.pattern.permute.xlu0 0
    %682 = vperm.xlu0 %681, %v584
    %v683 = vpop.permute.xlu0 %682
    %686 = vset.pattern.permute.xlu0 0
    %687 = vperm.xlu0 %686, %v585
    %v688 = vpop.permute.xlu0 %687
    %691 = vset.pattern.permute.xlu0 0
    %692 = vperm.xlu0 %691, %v586
    %v693 = vpop.permute.xlu0 %692
    %696 = vset.pattern.permute.xlu0 0
    %697 = vperm.xlu0 %696, %v587
    %v698 = vpop.permute.xlu0 %697
    %701 = vset.pattern.permute.xlu0 0
    %702 = vperm.xlu0 %701, %v588
    %v703 = vpop.permute.xlu0 %702
    %706 = vset.pattern.permute.xlu0 0
    %707 = vperm.xlu0 %706, %v589
    %v708 = vpop.permute.xlu0 %707
    %711 = vset.pattern.permute.xlu0 0
    %712 = vperm.xlu0 %711, %v590
    %v713 = vpop.permute.xlu0 %712
    %716 = vset.pattern.permute.xlu0 0
    %717 = vperm.xlu0 %716, %v591
    %v718 = vpop.permute.xlu0 %717
    %721 = vset.pattern.permute.xlu0 0
    %722 = vperm.xlu0 %721, %v592
    %v723 = vpop.permute.xlu0 %722
    %726 = vset.pattern.permute.xlu0 0
    %727 = vperm.xlu0 %726, %v593
    %v728 = vpop.permute.xlu0 %727
    %731 = vset.pattern.permute.xlu0 0
    %732 = vperm.xlu0 %731, %v594
    %v733 = vpop.permute.xlu0 %732
    %736 = vset.pattern.permute.xlu0 0
    %737 = vperm.xlu0 %736, %v595
    %v738 = vpop.permute.xlu0 %737
    %741 = vset.pattern.permute.xlu0 0
    %742 = vperm.xlu0 %741, %v596
    %v743 = vpop.permute.xlu0 %742
    %746 = vset.pattern.permute.xlu0 0
    %747 = vperm.xlu0 %746, %v597
    %v748 = vpop.permute.xlu0 %747
    %751 = vset.pattern.permute.xlu0 0
    %752 = vperm.xlu0 %751, %v598
    %v753 = vpop.permute.xlu0 %752
    %756 = vset.pattern.permute.xlu0 0
    %757 = vperm.xlu0 %756, %v599
    %v758 = vpop.permute.xlu0 %757
    %v760 = vadd.f32 %v536, %v603
    %v761 = vadd.f32 %v537, %v608
    %v762 = vadd.f32 %v538, %v613
    %v763 = vadd.f32 %v539, %v618
    %v764 = vadd.f32 %v540, %v623
    %v765 = vadd.f32 %v541, %v628
    %v766 = vadd.f32 %v542, %v633
    %v767 = vadd.f32 %v543, %v638
    %v768 = vadd.f32 %v544, %v643
    %v769 = vadd.f32 %v545, %v648
    %v770 = vadd.f32 %v546, %v653
    %v771 = vadd.f32 %v547, %v658
    %v772 = vadd.f32 %v548, %v663
    %v773 = vadd.f32 %v549, %v668
    %v774 = vadd.f32 %v550, %v673
    %v775 = vadd.f32 %v551, %v678
    %v776 = vadd.f32 %v552, %v683
    %v777 = vadd.f32 %v553, %v688
    %v778 = vadd.f32 %v554, %v693
    %v779 = vadd.f32 %v555, %v698
    %v780 = vadd.f32 %v556, %v703
    %v781 = vadd.f32 %v557, %v708
    %v782 = vadd.f32 %v558, %v713
    %v783 = vadd.f32 %v559, %v718
    %v784 = vadd.f32 %v560, %v723
    %v785 = vadd.f32 %v561, %v728
    %v786 = vadd.f32 %v562, %v733
    %v787 = vadd.f32 %v563, %v738
    %v788 = vadd.f32 %v564, %v743
    %v789 = vadd.f32 %v565, %v748
    %v790 = vadd.f32 %v566, %v753
    %v791 = vadd.f32 %v567, %v758
    %v792 = vmax.f32 %v760, 0.0
    %v793 = vmax.f32 %v761, 0.0
    %v794 = vmax.f32 %v762, 0.0
    %v795 = vmax.f32 %v763, 0.0
    %v796 = vmax.f32 %v764, 0.0
    %v797 = vmax.f32 %v765, 0.0
    %v798 = vmax.f32 %v766, 0.0
    %v799 = vmax.f32 %v767, 0.0
    %v800 = vmax.f32 %v768, 0.0
    %v801 = vmax.f32 %v769, 0.0
    %v802 = vmax.f32 %v770, 0.0
    %v803 = vmax.f32 %v771, 0.0
    %v804 = vmax.f32 %v772, 0.0
    %v805 = vmax.f32 %v773, 0.0
    %v806 = vmax.f32 %v774, 0.0
    %v807 = vmax.f32 %v775, 0.0
    %v808 = vmax.f32 %v776, 0.0
    %v809 = vmax.f32 %v777, 0.0
    %v810 = vmax.f32 %v778, 0.0
    %v811 = vmax.f32 %v779, 0.0
    %v812 = vmax.f32 %v780, 0.0
    %v813 = vmax.f32 %v781, 0.0
    %v814 = vmax.f32 %v782, 0.0
    %v815 = vmax.f32 %v783, 0.0
    %v816 = vmax.f32 %v784, 0.0
    %v817 = vmax.f32 %v785, 0.0
    %v818 = vmax.f32 %v786, 0.0
    %v819 = vmax.f32 %v787, 0.0
    %v820 = vmax.f32 %v788, 0.0
    %v821 = vmax.f32 %v789, 0.0
    %v822 = vmax.f32 %v790, 0.0
    %v823 = vmax.f32 %v791, 0.0
    %v824 = vpack.c.bf16 %v793, %v792
    %v825 = vpack.c.bf16 %v795, %v794
    %v826 = vpack.c.bf16 %v797, %v796
    %v827 = vpack.c.bf16 %v799, %v798
    %v828 = vpack.c.bf16 %v801, %v800
    %v829 = vpack.c.bf16 %v803, %v802
    %v830 = vpack.c.bf16 %v805, %v804
    %v831 = vpack.c.bf16 %v807, %v806
    %v832 = vpack.c.bf16 %v809, %v808
    %v833 = vpack.c.bf16 %v811, %v810
    %v834 = vpack.c.bf16 %v813, %v812
    %v835 = vpack.c.bf16 %v815, %v814
    %v836 = vpack.c.bf16 %v817, %v816
    %v837 = vpack.c.bf16 %v819, %v818
    %v838 = vpack.c.bf16 %v821, %v820
    %v839 = vpack.c.bf16 %v823, %v822
    %v840 = vld [vmem:[#allocation9] sm:$0xff]
    %v841 = vld [vmem:[#allocation9 + $0x8] sm:$0xff]
    %v842 = vld [vmem:[#allocation9 + $0x10] sm:$0xff]
    %v843 = vld [vmem:[#allocation9 + $0x18] sm:$0xff]
    %v844 = vld [vmem:[#allocation9 + $0x20] sm:$0xff]
    %v845 = vld [vmem:[#allocation9 + $0x28] sm:$0xff]
    %v846 = vld [vmem:[#allocation9 + $0x30] sm:$0xff]
    %v847 = vld [vmem:[#allocation9 + $0x38] sm:$0xff]
    %v848 = vld [vmem:[#allocation9 + $0x40] sm:$0xff]
    %v849 = vld [vmem:[#allocation9 + $0x48] sm:$0xff]
    %v850 = vld [vmem:[#allocation9 + $0x50] sm:$0xff]
    %v851 = vld [vmem:[#allocation9 + $0x58] sm:$0xff]
    %v852 = vld [vmem:[#allocation9 + $0x60] sm:$0xff]
    %v853 = vld [vmem:[#allocation9 + $0x68] sm:$0xff]
    %v854 = vld [vmem:[#allocation9 + $0x70] sm:$0xff]
    %v855 = vld [vmem:[#allocation9 + $0x78] sm:$0xff]
    %v856 = vld [vmem:[#allocation11] sm:$0xff]
    %v857 = vld [vmem:[#allocation11 + $0x8] sm:$0xff]
    %v858 = vld [vmem:[#allocation11 + $0x10] sm:$0xff]
    %v859 = vld [vmem:[#allocation11 + $0x18] sm:$0xff]
    %v860 = vld [vmem:[#allocation11 + $0x20] sm:$0xff]
    %v861 = vld [vmem:[#allocation11 + $0x28] sm:$0xff]
    %v862 = vld [vmem:[#allocation11 + $0x30] sm:$0xff]
    %v863 = vld [vmem:[#allocation11 + $0x38] sm:$0xff]
    %v864 = vld [vmem:[#allocation11 + $0x40] sm:$0xff]
    %v865 = vld [vmem:[#allocation11 + $0x48] sm:$0xff]
    %v866 = vld [vmem:[#allocation11 + $0x50] sm:$0xff]
    %v867 = vld [vmem:[#allocation11 + $0x58] sm:$0xff]
    %v868 = vld [vmem:[#allocation11 + $0x60] sm:$0xff]
    %v869 = vld [vmem:[#allocation11 + $0x68] sm:$0xff]
    %v870 = vld [vmem:[#allocation11 + $0x70] sm:$0xff]
    %v871 = vld [vmem:[#allocation11 + $0x78] sm:$0xff]
    %873 = vset.pattern.permute.xlu0 0
    %874 = vperm.xlu0 %873, %v856
    %v875 = vpop.permute.xlu0 %874
    %878 = vset.pattern.permute.xlu0 0
    %879 = vperm.xlu0 %878, %v857
    %v880 = vpop.permute.xlu0 %879
    %883 = vset.pattern.permute.xlu0 0
    %884 = vperm.xlu0 %883, %v858
    %v885 = vpop.permute.xlu0 %884
    %888 = vset.pattern.permute.xlu0 0
    %889 = vperm.xlu0 %888, %v859
    %v890 = vpop.permute.xlu0 %889
    %893 = vset.pattern.permute.xlu0 0
    %894 = vperm.xlu0 %893, %v860
    %v895 = vpop.permute.xlu0 %894
    %898 = vset.pattern.permute.xlu0 0
    %899 = vperm.xlu0 %898, %v861
    %v900 = vpop.permute.xlu0 %899
    %903 = vset.pattern.permute.xlu0 0
    %904 = vperm.xlu0 %903, %v862
    %v905 = vpop.permute.xlu0 %904
    %908 = vset.pattern.permute.xlu0 0
    %909 = vperm.xlu0 %908, %v863
    %v910 = vpop.permute.xlu0 %909
    %913 = vset.pattern.permute.xlu0 0
    %914 = vperm.xlu0 %913, %v864
    %v915 = vpop.permute.xlu0 %914
    %918 = vset.pattern.permute.xlu0 0
    %919 = vperm.xlu0 %918, %v865
    %v920 = vpop.permute.xlu0 %919
    %923 = vset.pattern.permute.xlu0 0
    %924 = vperm.xlu0 %923, %v866
    %v925 = vpop.permute.xlu0 %924
    %928 = vset.pattern.permute.xlu0 0
    %929 = vperm.xlu0 %928, %v867
    %v930 = vpop.permute.xlu0 %929
    %933 = vset.pattern.permute.xlu0 0
    %934 = vperm.xlu0 %933, %v868
    %v935 = vpop.permute.xlu0 %934
    %938 = vset.pattern.permute.xlu0 0
    %939 = vperm.xlu0 %938, %v869
    %v940 = vpop.permute.xlu0 %939
    %943 = vset.pattern.permute.xlu0 0
    %944 = vperm.xlu0 %943, %v870
    %v945 = vpop.permute.xlu0 %944
    %948 = vset.pattern.permute.xlu0 0
    %949 = vperm.xlu0 %948, %v871
    %v950 = vpop.permute.xlu0 %949
    %v968 = vunpack.c.l.b16 %v840
    %v969 = vunpack.c.h.b16 %v840
    %v970 = vunpack.c.l.b16 %v841
    %v971 = vunpack.c.h.b16 %v841
    %v972 = vunpack.c.l.b16 %v842
    %v973 = vunpack.c.h.b16 %v842
    %v974 = vunpack.c.l.b16 %v843
    %v975 = vunpack.c.h.b16 %v843
    %v976 = vunpack.c.l.b16 %v844
    %v977 = vunpack.c.h.b16 %v844
    %v978 = vunpack.c.l.b16 %v845
    %v979 = vunpack.c.h.b16 %v845
    %v980 = vunpack.c.l.b16 %v846
    %v981 = vunpack.c.h.b16 %v846
    %v982 = vunpack.c.l.b16 %v847
    %v983 = vunpack.c.h.b16 %v847
    %v984 = vunpack.c.l.b16 %v848
    %v985 = vunpack.c.h.b16 %v848
    %v986 = vunpack.c.l.b16 %v849
    %v987 = vunpack.c.h.b16 %v849
    %v988 = vunpack.c.l.b16 %v850
    %v989 = vunpack.c.h.b16 %v850
    %v990 = vunpack.c.l.b16 %v851
    %v991 = vunpack.c.h.b16 %v851
    %v992 = vunpack.c.l.b16 %v852
    %v993 = vunpack.c.h.b16 %v852
    %v994 = vunpack.c.l.b16 %v853
    %v995 = vunpack.c.h.b16 %v853
    %v996 = vunpack.c.l.b16 %v854
    %v997 = vunpack.c.h.b16 %v854
    %v998 = vunpack.c.l.b16 %v855
    %v999 = vunpack.c.h.b16 %v855
    %v1000 = vpack.c.b16 %v970, %v968
    %v1001 = vpack.c.b16 %v971, %v969
    %v1002 = vpack.c.b16 %v974, %v972
    %v1003 = vpack.c.b16 %v975, %v973
    %v1004 = vpack.c.b16 %v978, %v976
    %v1005 = vpack.c.b16 %v979, %v977
    %v1006 = vpack.c.b16 %v982, %v980
    %v1007 = vpack.c.b16 %v983, %v981
    %v1008 = vpack.c.b16 %v986, %v984
    %v1009 = vpack.c.b16 %v987, %v985
    %v1010 = vpack.c.b16 %v990, %v988
    %v1011 = vpack.c.b16 %v991, %v989
    %v1012 = vpack.c.b16 %v994, %v992
    %v1013 = vpack.c.b16 %v995, %v993
    %v1014 = vpack.c.b16 %v998, %v996
    %v1015 = vpack.c.b16 %v999, %v997
    %1032 = vmatprep.subr.bf16.mxu0 0
    %1033 = vmatpush1.bf16.msra.mxu0 %v824
    %1034 = vmatprep.subr.bf16.mxu0 0
    %1035 = vmatpush1.bf16.msra.mxu0 %v825
    %1036 = vmatprep.subr.bf16.mxu0 0
    %1037 = vmatpush1.bf16.msra.mxu0 %v826
    %1038 = vmatprep.subr.bf16.mxu0 0
    %1039 = vmatpush1.bf16.msra.mxu0 %v827
    %1040 = vmatprep.subr.bf16.mxu0 0
    %1041 = vmatpush1.bf16.msra.mxu0 %v828
    %1042 = vmatprep.subr.bf16.mxu0 0
    %1043 = vmatpush1.bf16.msra.mxu0 %v829
    %1044 = vmatprep.subr.bf16.mxu0 0
    %1045 = vmatpush1.bf16.msra.mxu0 %v830
    %1046 = vmatprep.subr.bf16.mxu0 0
    %1047 = vmatpush1.bf16.msra.mxu0 %v831
    %1048 = vmatprep.subr.bf16.mxu0 0
    %1049 = vmatpush1.bf16.msra.mxu0 %v832
    %1050 = vmatprep.subr.bf16.mxu0 0
    %1051 = vmatpush1.bf16.msra.mxu0 %v833
    %1052 = vmatprep.subr.bf16.mxu0 0
    %1053 = vmatpush1.bf16.msra.mxu0 %v834
    %1054 = vmatprep.subr.bf16.mxu0 0
    %1055 = vmatpush1.bf16.msra.mxu0 %v835
    %1056 = vmatprep.subr.bf16.mxu0 0
    %1057 = vmatpush1.bf16.msra.mxu0 %v836
    %1058 = vmatprep.subr.bf16.mxu0 0
    %1059 = vmatpush1.bf16.msra.mxu0 %v837
    %1060 = vmatprep.subr.bf16.mxu0 0
    %1061 = vmatpush1.bf16.msra.mxu0 %v838
    %1062 = vmatprep.subr.bf16.mxu0 0
    %1063 = vmatpush1.bf16.msra.mxu0 %v839
    %1064 = vmatprep.mubr.bf16.mxu0 %v1001
    %1065 = vmatmul.mubr.bf16.gmra.mrb[0].mxu0 %v1000
    %v1066 = vpop.f32.mrb[0].mxu0
    %v1067 = vadd.f32 %v875, %v1066
    %v1068 = vpop.f32.mrb[0].mxu0
    %v1069 = vpop.f32.mrb[0].mxu0
    %v1070 = vadd.f32 %v880, %v1069
    %v1071 = vpop.f32.mrb[0].mxu0
    %1072 = vmatprep.mubr.bf16.mxu0 %v1003
    %1073 = vmatmul.mubr.bf16.gmra.mrb[0].mxu0 %v1002
    %v1074 = vpop.f32.mrb[0].mxu0
    %v1075 = vadd.f32 %v885, %v1074
    %v1076 = vpop.f32.mrb[0].mxu0
    %v1077 = vpop.f32.mrb[0].mxu0
    %v1078 = vadd.f32 %v890, %v1077
    %v1079 = vpop.f32.mrb[0].mxu0
    %1080 = vmatprep.mubr.bf16.mxu0 %v1005
    %1081 = vmatmul.mubr.bf16.gmra.mrb[0].mxu0 %v1004
    %v1082 = vpop.f32.mrb[0].mxu0
    %v1083 = vadd.f32 %v895, %v1082
    %v1084 = vpop.f32.mrb[0].mxu0
    %v1085 = vpop.f32.mrb[0].mxu0
    %v1086 = vadd.f32 %v900, %v1085
    %v1087 = vpop.f32.mrb[0].mxu0
    %1088 = vmatprep.mubr.bf16.mxu0 %v1007
    %1089 = vmatmul.mubr.bf16.gmra.mrb[0].mxu0 %v1006
    %v1090 = vpop.f32.mrb[0].mxu0
    %v1091 = vadd.f32 %v905, %v1090
    %v1092 = vpop.f32.mrb[0].mxu0
    %v1093 = vpop.f32.mrb[0].mxu0
    %v1094 = vadd.f32 %v910, %v1093
    %v1095 = vpop.f32.mrb[0].mxu0
    %1096 = vmatprep.mubr.bf16.mxu0 %v1009
    %1097 = vmatmul.mubr.bf16.gmra.mrb[0].mxu0 %v1008
    %v1098 = vpop.f32.mrb[0].mxu0
    %v1099 = vadd.f32 %v915, %v1098
    %v1100 = vpop.f32.mrb[0].mxu0
    %v1101 = vpop.f32.mrb[0].mxu0
    %v1102 = vadd.f32 %v920, %v1101
    %v1103 = vpop.f32.mrb[0].mxu0
    %1104 = vmatprep.mubr.bf16.mxu0 %v1011
    %1105 = vmatmul.mubr.bf16.gmra.mrb[0].mxu0 %v1010
    %v1106 = vpop.f32.mrb[0].mxu0
    %v1107 = vadd.f32 %v925, %v1106
    %v1108 = vpop.f32.mrb[0].mxu0
    %v1109 = vpop.f32.mrb[0].mxu0
    %v1110 = vadd.f32 %v930, %v1109
    %v1111 = vpop.f32.mrb[0].mxu0
    %1112 = vmatprep.mubr.bf16.mxu0 %v1013
    %1113 = vmatmul.mubr.bf16.gmra.mrb[0].mxu0 %v1012
    %v1114 = vpop.f32.mrb[0].mxu0
    %v1115 = vadd.f32 %v935, %v1114
    %v1116 = vpop.f32.mrb[0].mxu0
    %v1117 = vpop.f32.mrb[0].mxu0
    %v1118 = vadd.f32 %v940, %v1117
    %v1119 = vpop.f32.mrb[0].mxu0
    %1120 = vmatprep.mubr.bf16.mxu0 %v1015
    %1121 = vmatmul.mubr.bf16.gmra.mrb[0].mxu0 %v1014
    %v1122 = vpop.f32.mrb[0].mxu0
    %v1123 = vadd.f32 %v945, %v1122
    %v1124 = vpop.f32.mrb[0].mxu0
    %v1125 = vpop.f32.mrb[0].mxu0
    %v1126 = vadd.f32 %v950, %v1125
    %v1127 = vpop.f32.mrb[0].mxu0
    %1128 = vdwg.mxu0
    %v1129 = vmax.f32 %v1067, 0.0
    %v1130 = vmax.f32 %v1070, 0.0
    %v1131 = vmax.f32 %v1075, 0.0
    %v1132 = vmax.f32 %v1078, 0.0
    %v1133 = vmax.f32 %v1083, 0.0
    %v1134 = vmax.f32 %v1086, 0.0
    %v1135 = vmax.f32 %v1091, 0.0
    %v1136 = vmax.f32 %v1094, 0.0
    %v1137 = vmax.f32 %v1099, 0.0
    %v1138 = vmax.f32 %v1102, 0.0
    %v1139 = vmax.f32 %v1107, 0.0
    %v1140 = vmax.f32 %v1110, 0.0
    %v1141 = vmax.f32 %v1115, 0.0
    %v1142 = vmax.f32 %v1118, 0.0
    %v1143 = vmax.f32 %v1123, 0.0
    %v1144 = vmax.f32 %v1126, 0.0
    %v1145 = vpack.c.bf16 %v1130, %v1129
    %v1146 = vpack.c.bf16 %v1132, %v1131
    %v1147 = vpack.c.bf16 %v1134, %v1133
    %v1148 = vpack.c.bf16 %v1136, %v1135
    %v1149 = vpack.c.bf16 %v1138, %v1137
    %v1150 = vpack.c.bf16 %v1140, %v1139
    %v1151 = vpack.c.bf16 %v1142, %v1141
    %v1152 = vpack.c.bf16 %v1144, %v1143
    %v1153 = vld [vmem:[#allocation12] sm:$0xf]
    %v1154 = vld [vmem:[#allocation12 + $0x4] sm:$0xf]
    %v1155 = vld [vmem:[#allocation12 + $0x8] sm:$0xf]
    %v1156 = vld [vmem:[#allocation12 + $0xc] sm:$0xf]
    %v1157 = vld [vmem:[#allocation12 + $0x10] sm:$0xf]
    %v1158 = vld [vmem:[#allocation12 + $0x14] sm:$0xf]
    %v1159 = vld [vmem:[#allocation12 + $0x18] sm:$0xf]
    %v1160 = vld [vmem:[#allocation12 + $0x1c] sm:$0xf]
    %v1161 = vld [vmem:[#allocation14] sm:$0xff]
    %v1162 = vld [vmem:[#allocation14 + $0x8] sm:$0xff]
    %v1163 = vld [vmem:[#allocation14 + $0x10] sm:$0xff]
    %v1164 = vld [vmem:[#allocation14 + $0x18] sm:$0xff]
    %v1165 = vld [vmem:[#allocation14 + $0x20] sm:$0xff]
    %v1166 = vld [vmem:[#allocation14 + $0x28] sm:$0xff]
    %v1167 = vld [vmem:[#allocation14 + $0x30] sm:$0xff]
    %v1168 = vld [vmem:[#allocation14 + $0x38] sm:$0xff]
    %1170 = vset.pattern.permute.xlu0 0
    %1171 = vperm.xlu0 %1170, %v1161
    %v1172 = vpop.permute.xlu0 %1171
    %1175 = vset.pattern.permute.xlu0 0
    %1176 = vperm.xlu0 %1175, %v1162
    %v1177 = vpop.permute.xlu0 %1176
    %1180 = vset.pattern.permute.xlu0 0
    %1181 = vperm.xlu0 %1180, %v1163
    %v1182 = vpop.permute.xlu0 %1181
    %1185 = vset.pattern.permute.xlu0 0
    %1186 = vperm.xlu0 %1185, %v1164
    %v1187 = vpop.permute.xlu0 %1186
    %1190 = vset.pattern.permute.xlu0 0
    %1191 = vperm.xlu0 %1190, %v1165
    %v1192 = vpop.permute.xlu0 %1191
    %1195 = vset.pattern.permute.xlu0 0
    %1196 = vperm.xlu0 %1195, %v1166
    %v1197 = vpop.permute.xlu0 %1196
    %1200 = vset.pattern.permute.xlu0 0
    %1201 = vperm.xlu0 %1200, %v1167
    %v1202 = vpop.permute.xlu0 %1201
    %1205 = vset.pattern.permute.xlu0 0
    %1206 = vperm.xlu0 %1205, %v1168
    %v1207 = vpop.permute.xlu0 %1206
    %v1217 = vunpack.c.l.b16 %v1153
    %v1218 = vunpack.c.l.b16 %v1154
    %v1219 = vunpack.c.l.b16 %v1155
    %v1220 = vunpack.c.l.b16 %v1156
    %v1221 = vunpack.c.l.b16 %v1157
    %v1222 = vunpack.c.l.b16 %v1158
    %v1223 = vunpack.c.l.b16 %v1159
    %v1224 = vunpack.c.l.b16 %v1160
    %v1225 = vpack.c.b16 %v1218, %v1217
    %v1226 = vpack.c.b16 %v1220, %v1219
    %v1227 = vpack.c.b16 %v1222, %v1221
    %v1228 = vpack.c.b16 %v1224, %v1223
    %1233 = vmatprep.subr.bf16.mxu0 0
    %1234 = vmatpush1.bf16.msra.mxu0 %v1145
    %1235 = vmatprep.subr.bf16.mxu0 0
    %1236 = vmatpush1.bf16.msra.mxu0 %v1146
    %1237 = vmatprep.subr.bf16.mxu0 0
    %1238 = vmatpush1.bf16.msra.mxu0 %v1147
    %1239 = vmatprep.subr.bf16.mxu0 0
    %1240 = vmatpush1.bf16.msra.mxu0 %v1148
    %1241 = vmatprep.subr.bf16.mxu0 0
    %1242 = vmatpush1.bf16.msra.mxu0 %v1149
    %1243 = vmatprep.subr.bf16.mxu0 0
    %1244 = vmatpush1.bf16.msra.mxu0 %v1150
    %1245 = vmatprep.subr.bf16.mxu0 0
    %1246 = vmatpush1.bf16.msra.mxu0 %v1151
    %1247 = vmatprep.subr.bf16.mxu0 0
    %1248 = vmatpush1.bf16.msra.mxu0 %v1152
    %1249 = vmatprep.subr.bf16.mxu0 0
    %1250 = vmatpush1.bf16.msra.mxu0 0
    %1251 = vmatprep.subr.bf16.mxu0 0
    %1252 = vmatpush1.bf16.msra.mxu0 0
    %1253 = vmatprep.subr.bf16.mxu0 0
    %1254 = vmatpush1.bf16.msra.mxu0 0
    %1255 = vmatprep.subr.bf16.mxu0 0
    %1256 = vmatpush1.bf16.msra.mxu0 0
    %1257 = vmatprep.subr.bf16.mxu0 0
    %1258 = vmatpush1.bf16.msra.mxu0 0
    %1259 = vmatprep.subr.bf16.mxu0 0
    %1260 = vmatpush1.bf16.msra.mxu0 0
    %1261 = vmatprep.subr.bf16.mxu0 0
    %1262 = vmatpush1.bf16.msra.mxu0 0
    %1263 = vmatprep.subr.bf16.mxu0 0
    %1264 = vmatpush1.bf16.msra.mxu0 0
    %1265 = vmatprep.mubr.bf16.mxu0 0
    %1266 = vmatmul.mubr.bf16.gmra.mrb[0].mxu0 %v1225
    %v1267 = vpop.f32.mrb[0].mxu0
    %v1268 = vadd.f32 %v1172, %v1267
    %v1269 = vpop.f32.mrb[0].mxu0
    %v1270 = vpop.f32.mrb[0].mxu0
    %v1271 = vadd.f32 %v1177, %v1270
    %v1272 = vpop.f32.mrb[0].mxu0
    %1273 = vmatprep.mubr.bf16.mxu0 0
    %1274 = vmatmul.mubr.bf16.gmra.mrb[0].mxu0 %v1226
    %v1275 = vpop.f32.mrb[0].mxu0
    %v1276 = vadd.f32 %v1182, %v1275
    %v1277 = vpop.f32.mrb[0].mxu0
    %v1278 = vpop.f32.mrb[0].mxu0
    %v1279 = vadd.f32 %v1187, %v1278
    %v1280 = vpop.f32.mrb[0].mxu0
    %1281 = vmatprep.mubr.bf16.mxu0 0
    %1282 = vmatmul.mubr.bf16.gmra.mrb[0].mxu0 %v1227
    %v1283 = vpop.f32.mrb[0].mxu0
    %v1284 = vadd.f32 %v1192, %v1283
    %v1285 = vpop.f32.mrb[0].mxu0
    %v1286 = vpop.f32.mrb[0].mxu0
    %v1287 = vadd.f32 %v1197, %v1286
    %v1288 = vpop.f32.mrb[0].mxu0
    %1289 = vmatprep.mubr.bf16.mxu0 0
    %1290 = vmatmul.mubr.bf16.gmra.mrb[0].mxu0 %v1228
    %v1291 = vpop.f32.mrb[0].mxu0
    %v1292 = vadd.f32 %v1202, %v1291
    %v1293 = vpop.f32.mrb[0].mxu0
    %v1294 = vpop.f32.mrb[0].mxu0
    %v1295 = vadd.f32 %v1207, %v1294
    %v1296 = vpop.f32.mrb[0].mxu0
    %1297 = vdwg.mxu0
    %v1298 = vmax.f32 %v1268, 0.0
    %v1299 = vmax.f32 %v1271, 0.0
    %v1300 = vmax.f32 %v1276, 0.0
    %v1301 = vmax.f32 %v1279, 0.0
    %v1302 = vmax.f32 %v1284, 0.0
    %v1303 = vmax.f32 %v1287, 0.0
    %v1304 = vmax.f32 %v1292, 0.0
    %v1305 = vmax.f32 %v1295, 0.0
    %v1306 = vld [vmem:[#allocation15] sm:$0xff]
    %v1307 = vld [vmem:[#allocation15 + $0x8] sm:$0xff]
    %v1308 = vld [vmem:[#allocation15 + $0x10] sm:$0xff]
    %v1309 = vld [vmem:[#allocation15 + $0x18] sm:$0xff]
    %v1310 = vld [vmem:[#allocation15 + $0x20] sm:$0xff]
    %v1311 = vld [vmem:[#allocation15 + $0x28] sm:$0xff]
    %v1312 = vld [vmem:[#allocation15 + $0x30] sm:$0xff]
    %v1313 = vld [vmem:[#allocation15 + $0x38] sm:$0xff]
    %1315 = vset.pattern.permute.xlu0 0
    %1316 = vperm.xlu0 %1315, %v1306
    %v1317 = vpop.permute.xlu0 %1316
    %1320 = vset.pattern.permute.xlu0 0
    %1321 = vperm.xlu0 %1320, %v1307
    %v1322 = vpop.permute.xlu0 %1321
    %1325 = vset.pattern.permute.xlu0 0
    %1326 = vperm.xlu0 %1325, %v1308
    %v1327 = vpop.permute.xlu0 %1326
    %1330 = vset.pattern.permute.xlu0 0
    %1331 = vperm.xlu0 %1330, %v1309
    %v1332 = vpop.permute.xlu0 %1331
    %1335 = vset.pattern.permute.xlu0 0
    %1336 = vperm.xlu0 %1335, %v1310
    %v1337 = vpop.permute.xlu0 %1336
    %1340 = vset.pattern.permute.xlu0 0
    %1341 = vperm.xlu0 %1340, %v1311
    %v1342 = vpop.permute.xlu0 %1341
    %1345 = vset.pattern.permute.xlu0 0
    %1346 = vperm.xlu0 %1345, %v1312
    %v1347 = vpop.permute.xlu0 %1346
    %1350 = vset.pattern.permute.xlu0 0
    %1351 = vperm.xlu0 %1350, %v1313
    %v1352 = vpop.permute.xlu0 %1351
    %v1354 = vmul.f32 %v1317, %v1298
    %v1355 = vmul.f32 %v1322, %v1299
    %v1356 = vmul.f32 %v1327, %v1300
    %v1357 = vmul.f32 %v1332, %v1301
    %v1358 = vmul.f32 %v1337, %v1302
    %v1359 = vmul.f32 %v1342, %v1303
    %v1360 = vmul.f32 %v1347, %v1304
    %v1361 = vmul.f32 %v1352, %v1305
    %v1362 = vadd.f32 %v1354, %v1355
    %v1363 = vadd.f32 %v1362, %v1356
    %v1364 = vadd.f32 %v1363, %v1357
    %v1365 = vadd.f32 %v1364, %v1358
    %v1366 = vadd.f32 %v1365, %v1359
    %v1367 = vadd.f32 %v1366, %v1360
    %v1368 = vadd.f32 %v1367, %v1361
    %v1369 = vrot.slane %v1368, 4
    %v1370 = vadd.f32 %v1368, %v1369
    %v1371 = vrot.slane %v1370, 2
    %v1372 = vadd.f32 %v1370, %v1371
    %v1373 = vrot.slane %v1372, 1
    %v1374 = vadd.f32 %v1372, %v1373
    %v1375 = vld [vmem:[#allocation2] sm:$0x1]
    %1377 = vset.pattern.permute.xlu0 0
    %1378 = vperm.xlu0 %1377, %v1375
    %v1379 = vpop.permute.xlu0 %1378
    %v1381 = vlaneseq
    %v1382 = vshrl.u32 %v1381, 7
    %v1383 = vsub.s32 0, %v1382
    %v1384 = vrot.slane %v1379, %v1383
    %v1385 = vadd.f32 %v1374, %v1384
    %v1386 = vxor.u32 %v1385, 2147483648
    %v1387 = vmul.f32 %v1386, 1.442695
    %v1388 = vpow.pop %v1387
    %v1389 = vadd.f32 %v1388, 1.0
    %v1390 = vrcp.pop %v1389
    %v1391 = vmul.f32 1.0, %v1390
    %1392 = vst [vmem:[#allocation17] sm:$0x1] %v1391
    // Predicated region
    $region70: #{tpu_custom_call.1} parent=1 // pred_check
      _
    $region71: #{tpu_custom_call.1} parent=1 // pred_check_branch
      %1394 = sbr.rel (0) target = $region73
    $region72: #{tpu_custom_call.1} parent=1 // pred_region
      %s1396 = ssub.s32 16, 16
      %1397 = vsyncadd [#allocation5], %s1396
      %s1399 = sshll.u32 [#allocation17], 4
      %s1400 = int_to_ptr.vmem [resolvable:$true] %s1399
      %1402 = dma.vmem_to_hbm [thread:$0]  %s1400, 16, %s9, [#allocation5]
    $region73: #{tpu_custom_call.1} parent=1 // pred_fallthru
      _
    // Predicated region
    $region74: #{tpu_custom_call.1} parent=1 // pred_check
      _
    $region75: #{tpu_custom_call.1} parent=1 // pred_check_branch
      %1404 = sbr.rel (0) target = $region77
    $region76: #{tpu_custom_call.1} parent=1 // pred_region
      %1405 = dma.done [#allocation5], 16
    $region77: #{tpu_custom_call.1} parent=1 // pred_fallthru
      _
    %1406 = vsyncpa [#allocation4], 1
    %1407 = vsyncpa [#allocation7], 1
    %1408 = vsyncpa [#allocation10], 1
    %1409 = vsyncpa [#allocation13], 1
    %1410 = vsyncpa [#allocation16], 1
    %1411 = vsyncpa [#allocation5], 1

</llo_original>
